<compile_context>
chip_gen: v7x
topology: tpu7x:2x2x1
jax: 0.10.0
libtpu: 0.0.40
codegen_flags: <defaults>
</compile_context>

<pallas_src>
import functools

import jax
import jax.numpy as jnp
from jax.experimental import pallas as pl
from jax.experimental.pallas import tpu as pltpu


def gated_conv_kernel(halo_ref, x_ref, w_ref, b_ref, o_ref, xw_ref):
    # halo_ref: (pad, D)       rows preceding this tile (zeros for tile 0)
    # x_ref:    (TL, D)        sequence tile
    # w_ref:    (K, D, 2D)     conv taps; w_ref[k] == torch_w[:, :, k].T
    # b_ref:    (1, 2D)        conv bias (f32)
    # o_ref:    (TL, D)        gated output tile
    # xw_ref:   (OFF+TL, D)    staging scratch: x at rows [OFF, OFF+TL),
    #                          halo at rows [OFF-pad, OFF)
    TL, D = x_ref.shape
    pad = halo_ref.shape[0]
    K = w_ref.shape[0]
    OFF = xw_ref.shape[0] - TL          # sublane-aligned offset of x in scratch

    # Stage halo + tile: one tiny masked store + one aligned full-tile store.
    # No value-level concatenates, no (TL, K*D) temporary.
    xw_ref[pl.ds(OFF - pad, pad), :] = halo_ref[...]
    xw_ref[pl.ds(OFF, TL), :] = x_ref[...]

    # K accumulated D-contraction matmuls with f32 accumulation.  Tap K-1 is
    # the unshifted tile -> feed x_ref directly (saves one full-tile read);
    # earlier taps read a shifted window of the staged scratch.
    acc = jnp.dot(x_ref[...], w_ref[K - 1], preferred_element_type=jnp.float32)
    for k in range(K - 1):
        acc += jnp.dot(xw_ref[pl.ds(OFF - pad + k, TL), :], w_ref[k],
                       preferred_element_type=jnp.float32)
    acc += b_ref[...]                                    # bias in f32

    out, gate = acc[:, :D], acc[:, D:]
    o_ref[...] = (out * jax.nn.sigmoid(gate)).astype(o_ref.dtype)


@functools.partial(jax.jit, static_argnames=("padding", "seq_tile"))
def gated_convolution(x, weight, bias, padding=1, seq_tile=512):
    """One GatedConvolution layer.

    x:      (B, L, D)  channels-last activations (f32 or bf16)
    weight: (2D, D, K) torch Conv1d weight layout
    bias:   (2D,)
    """
    B, L, D = x.shape
    K = weight.shape[-1]
    pad = 2 * padding
    assert pad == K - 1, "output length matches torch only when 2*padding == K-1"

    dt = x.dtype
    TL = min(seq_tile, L)               # multiple of 8 whenever TL < L
    NT = pl.cdiv(L, TL)
    L_p = NT * TL
    x_p = x if L_p == L else jnp.pad(x, ((0, 0), (0, L_p - L), (0, 0)))

    # Halo rows feeding each tile: zeros for tile 0, last `pad` rows of the
    # previous tile otherwise.  One reshape/slice/concat -> tiny (B,NT,pad,D)
    # array, negligible HBM traffic, no full-tensor left-pad of x.
    x_tiles = x_p.reshape(B, NT, TL, D)
    zero_halo = jnp.zeros((B, 1, pad, D), dt)
    halo = (zero_halo if NT == 1 else
            jnp.concatenate([zero_halo, x_tiles[:, :-1, TL - pad:, :]], axis=1))

    # Per-tap weights: (K, D, 2D) with w_taps[k] == weight[:, :, k].T
    w_taps = jnp.transpose(weight, (2, 1, 0)).astype(dt)
    b2d = bias.reshape(1, 2 * D).astype(jnp.float32)

    OFF = ((pad + 7) // 8) * 8          # sublane-aligned scratch offset for x
    itemsize = jnp.dtype(dt).itemsize

    # VMEM footprint: double-buffered activation tiles, single-buffered fused
    # weight, staging scratch and the f32 accumulator; ~1.5x headroom, clamped
    # to [32 MiB, 64 MiB] (v7x has only 64 MiB physical VMEM per core).
    est = (2 * (TL * D + pad * D + TL * D) * itemsize   # x/halo/out, 2-buffered
           + K * D * 2 * D * itemsize                   # weight, 1-buffered
           + 2 * D * 4                                  # bias
           + (OFF + TL) * D * itemsize                  # staging scratch
           + TL * 2 * D * 4)                            # f32 accumulator
    vmem_bytes = min(64 * 1024 * 1024, max(32 * 1024 * 1024, int(1.5 * est)))

    out = pl.pallas_call(
        gated_conv_kernel,
        out_shape=jax.ShapeDtypeStruct((B, L_p, D), dt),
        grid_spec=pltpu.PrefetchScalarGridSpec(
            num_scalar_prefetch=0,
            grid=(B, NT),
            in_specs=[
                pl.BlockSpec((None, None, pad, D), lambda b, i: (b, i, 0, 0)),
                pl.BlockSpec((None, TL, D), lambda b, i: (b, i, 0)),
                # Grid-invariant blocks: fetched once; single-buffered so only
                # one copy of the fused weight is resident in VMEM.
                pl.BlockSpec((K, D, 2 * D), lambda b, i: (0, 0, 0),
                             pipeline_mode=pl.Buffered(1)),
                pl.BlockSpec((1, 2 * D), lambda b, i: (0, 0),
                             pipeline_mode=pl.Buffered(1)),
            ],
            out_specs=pl.BlockSpec((None, TL, D), lambda b, i: (b, i, 0)),
            scratch_shapes=[pltpu.VMEM((OFF + TL, D), dt)],
        ),
        compiler_params=pltpu.CompilerParams(
            dimension_semantics=("parallel", "parallel"),
            vmem_limit_bytes=vmem_bytes,
        ),
    )(halo, x_p, w_taps, b2d)

    return out if L_p == L else out[:, :L, :]


def glu_forward(x, weights, biases, padding=1, seq_tile=512):
    """GLU.forward: apply the gated convolutions sequentially."""
    for w, b in zip(weights, biases):
        x = gated_convolution(x, w, b, padding=padding, seq_tile=seq_tile)
    return x


# ----------------------------- pure-JAX reference ---------------------------

def ref_gated_convolution(x, weight, bias, padding=1):
    B, L, D = x.shape
    K = weight.shape[-1]
    pad = 2 * padding
    xp = jnp.pad(x.astype(jnp.float32), ((0, 0), (pad, 0), (0, 0)))
    y = jnp.broadcast_to(bias.astype(jnp.float32)[None, None, :], (B, L, 2 * D))
    for k in range(K):
        y = y + jnp.einsum("bld,od->blo", xp[:, k:k + L, :],
                           weight[:, :, k].astype(jnp.float32))
    out, gate = y[..., :D], y[..., D:]
    return (out * jax.nn.sigmoid(gate)).astype(jnp.float32)


def ref_glu(x, weights, biases, padding=1):
    x = x.astype(jnp.float32)
    for w, b in zip(weights, biases):
        x = ref_gated_convolution(x, w, b, padding=padding)
    return x


# ------------------------------------ main -----------------------------------

if __name__ == "__main__":
    B, L, D, K, PADDING, NUM_LAYERS = 2, 8, 32, 3, 1, 2

    key = jax.random.PRNGKey(0)
    kx, key = jax.random.split(key)
    x = jax.random.normal(kx, (B, L, D), dtype=jnp.float32)

    # Deterministic params mirroring torch Conv1d default init bounds.
    fan_in = D * K
    bound = 1.0 / (float(fan_in) ** 0.5)
    weights, biases = [], []
    for _ in range(NUM_LAYERS):
        kw, kb, key = jax.random.split(key, 3)
        weights.append(jax.random.uniform(kw, (2 * D, D, K), jnp.float32,
                                          -bound, bound))
        biases.append(jax.random.uniform(kb, (2 * D,), jnp.float32,
                                         -bound, bound))

    # f32, single sequence tile: tight check against the reference.
    out = jax.block_until_ready(glu_forward(x, weights, biases, padding=PADDING))
    ref = ref_glu(x, weights, biases, padding=PADDING)
    assert out.shape == (B, L, D)
    assert jnp.allclose(out, ref, atol=1e-4, rtol=1e-4), "f32 mismatch vs reference"

    # f32, multi-tile path (exercises halos + staged scratch across tiles).
    kx2, key = jax.random.split(key)
    L2, TILE2 = 48, 16
    x2 = jax.random.normal(kx2, (B, L2, D), dtype=jnp.float32)
    out2 = jax.block_until_ready(
        glu_forward(x2, weights, biases, padding=PADDING, seq_tile=TILE2))
    ref2 = ref_glu(x2, weights, biases, padding=PADDING)
    assert jnp.allclose(out2, ref2, atol=1e-4, rtol=1e-4), "multi-tile mismatch"

    # bf16 activations/weights on the MXU, f32 accumulation.
    out_bf16 = jax.block_until_ready(
        glu_forward(x.astype(jnp.bfloat16), weights, biases, padding=PADDING))
    assert out_bf16.dtype == jnp.bfloat16
    assert jnp.allclose(out_bf16.astype(jnp.float32), ref, atol=1e-1, rtol=1e-1), \
        "bf16 mismatch vs reference"

    print("KERNEL_OK")
</pallas_src>

<mosaic_0001>
module attributes {stable_mosaic.version = 11 : i64} {
  func.func @gated_conv_kernel(%arg0: i32, %arg1: i32, %arg2: memref<1x1x2x32xf32, #tpu.memory_space<vmem>>, %arg3: memref<1x8x32xf32, #tpu.memory_space<vmem>>, %arg4: memref<3x32x64xf32, #tpu.memory_space<vmem>>, %arg5: memref<1x64xf32, #tpu.memory_space<vmem>>, %arg6: memref<1x8x32xf32, #tpu.memory_space<vmem>>, %arg7: memref<16x32xf32, #tpu.memory_space<vmem>>) attributes {dimension_semantics = [#tpu.dimension_semantics<parallel>, #tpu.dimension_semantics<parallel>], iteration_bounds = array<i64: 2, 1>, scalar_prefetch = 0 : i64, scratch_operands = 1 : i64, tpu.core_type = #tpu.core_type<tc>, window_params = [{transform_indices = @transform_0, window_bounds = array<i64: 1, 1, 2, 32>}, {transform_indices = @transform_1, window_bounds = array<i64: 1, 8, 32>}, {pipeline_mode = #tpu.pipeline_mode<synchronous>, transform_indices = @transform_2, window_bounds = array<i64: 3, 32, 64>}, {pipeline_mode = #tpu.pipeline_mode<synchronous>, transform_indices = @transform_3, window_bounds = array<i64: 1, 64>}, {transform_indices = @transform_4, window_bounds = array<i64: 1, 8, 32>}]} {
    %c0 = arith.constant 0 : index
    %c0_0 = arith.constant 0 : index
    %c0_1 = arith.constant 0 : index
    %c0_2 = arith.constant 0 : index
    %0 = vector.load %arg2[%c0, %c0_0, %c0_1, %c0_2] : memref<1x1x2x32xf32, #tpu.memory_space<vmem>>, vector<1x1x2x32xf32>
    %1 = vector.shape_cast %0 : vector<1x1x2x32xf32> to vector<2x32xf32>
    %c6 = arith.constant 6 : index
    %c0_3 = arith.constant 0 : index
    %2 = vector.load %arg7[%c6, %c0_3] : memref<16x32xf32, #tpu.memory_space<vmem>>, vector<2x32xf32>
    tpu.vector_store %arg7[%c6, %c0_3], %1 {strides = array<i32>} : memref<16x32xf32, #tpu.memory_space<vmem>>, vector<2x32xf32>,
    %c0_4 = arith.constant 0 : index
    %c0_5 = arith.constant 0 : index
    %c0_6 = arith.constant 0 : index
    %3 = vector.load %arg3[%c0_4, %c0_5, %c0_6] : memref<1x8x32xf32, #tpu.memory_space<vmem>>, vector<1x8x32xf32>
    %4 = vector.shape_cast %3 : vector<1x8x32xf32> to vector<8x32xf32>
    %c8 = arith.constant 8 : index
    %c0_7 = arith.constant 0 : index
    %5 = vector.load %arg7[%c8, %c0_7] : memref<16x32xf32, #tpu.memory_space<vmem>>, vector<8x32xf32>
    tpu.vector_store %arg7[%c8, %c0_7], %4 {strides = array<i32>} : memref<16x32xf32, #tpu.memory_space<vmem>>, vector<8x32xf32>,
    %c0_8 = arith.constant 0 : index
    %c0_9 = arith.constant 0 : index
    %c0_10 = arith.constant 0 : index
    %6 = vector.load %arg3[%c0_8, %c0_9, %c0_10] : memref<1x8x32xf32, #tpu.memory_space<vmem>>, vector<1x8x32xf32>
    %7 = vector.shape_cast %6 : vector<1x8x32xf32> to vector<8x32xf32>
    %c2 = arith.constant 2 : index
    %c0_11 = arith.constant 0 : index
    %c0_12 = arith.constant 0 : index
    %8 = vector.load %arg4[%c2, %c0_11, %c0_12] : memref<3x32x64xf32, #tpu.memory_space<vmem>>, vector<1x32x64xf32>
    %9 = vector.shape_cast %8 : vector<1x32x64xf32> to vector<32x64xf32>
    %cst = arith.constant dense<0.000000e+00> : vector<8x64xf32>
    %10 = tpu.matmul %7, %9, %cst {dimension_numbers = #tpu.dot_dimension_numbers<[1], [0], [0], [1], [0, 0, 1, 1], [], []>} : vector<8x32xf32>, vector<32x64xf32>, vector<8x64xf32> -> vector<8x64xf32>
    %c6_13 = arith.constant 6 : index
    %c0_14 = arith.constant 0 : index
    %11 = vector.load %arg7[%c6_13, %c0_14] : memref<16x32xf32, #tpu.memory_space<vmem>>, vector<8x32xf32>
    %c0_15 = arith.constant 0 : index
    %c0_16 = arith.constant 0 : index
    %c0_17 = arith.constant 0 : index
    %12 = vector.load %arg4[%c0_15, %c0_16, %c0_17] : memref<3x32x64xf32, #tpu.memory_space<vmem>>, vector<1x32x64xf32>
    %13 = vector.shape_cast %12 : vector<1x32x64xf32> to vector<32x64xf32>
    %cst_18 = arith.constant dense<0.000000e+00> : vector<8x64xf32>
    %14 = tpu.matmul %11, %13, %cst_18 {dimension_numbers = #tpu.dot_dimension_numbers<[1], [0], [0], [1], [0, 0, 1, 1], [], []>} : vector<8x32xf32>, vector<32x64xf32>, vector<8x64xf32> -> vector<8x64xf32>
    %15 = arith.addf %10, %14 : vector<8x64xf32>
    %c7 = arith.constant 7 : index
    %c0_19 = arith.constant 0 : index
    %16 = vector.load %arg7[%c7, %c0_19] : memref<16x32xf32, #tpu.memory_space<vmem>>, vector<8x32xf32>
    %c1 = arith.constant 1 : index
    %c0_20 = arith.constant 0 : index
    %c0_21 = arith.constant 0 : index
    %17 = vector.load %arg4[%c1, %c0_20, %c0_21] : memref<3x32x64xf32, #tpu.memory_space<vmem>>, vector<1x32x64xf32>
    %18 = vector.shape_cast %17 : vector<1x32x64xf32> to vector<32x64xf32>
    %cst_22 = arith.constant dense<0.000000e+00> : vector<8x64xf32>
    %19 = tpu.matmul %16, %18, %cst_22 {dimension_numbers = #tpu.dot_dimension_numbers<[1], [0], [0], [1], [0, 0, 1, 1], [], []>} : vector<8x32xf32>, vector<32x64xf32>, vector<8x64xf32> -> vector<8x64xf32>
    %20 = arith.addf %15, %19 : vector<8x64xf32>
    %c0_23 = arith.constant 0 : index
    %c0_24 = arith.constant 0 : index
    %21 = vector.load %arg5[%c0_23, %c0_24] : memref<1x64xf32, #tpu.memory_space<vmem>>, vector<1x64xf32>
    %22 = vector.broadcast %21 : vector<1x64xf32> to vector<8x64xf32>
    %23 = arith.addf %20, %22 : vector<8x64xf32>
    %24 = vector.extract_strided_slice %23 {offsets = [0, 0], sizes = [8, 32], strides = [1, 1]} : vector<8x64xf32> to vector<8x32xf32>
    %25 = vector.extract_strided_slice %23 {offsets = [0, 32], sizes = [8, 32], strides = [1, 1]} : vector<8x64xf32> to vector<8x32xf32>
    %26 = arith.negf %25 : vector<8x32xf32>
    %27 = math.exp %26 : vector<8x32xf32>
    %cst_25 = arith.constant 1.000000e+00 : f32
    %28 = vector.broadcast %cst_25 : f32 to vector<8x32xf32>
    %29 = arith.addf %28, %27 : vector<8x32xf32>
    %30 = arith.divf %28, %29 : vector<8x32xf32>
    %31 = arith.mulf %24, %30 : vector<8x32xf32>
    %c0_26 = arith.constant 0 : index
    %c0_27 = arith.constant 0 : index
    %c0_28 = arith.constant 0 : index
    %32 = vector.load %arg6[%c0_26, %c0_27, %c0_28] : memref<1x8x32xf32, #tpu.memory_space<vmem>>, vector<1x8x32xf32>
    %33 = vector.shape_cast %32 : vector<1x8x32xf32> to vector<8x32xf32>
    %34 = vector.shape_cast %31 : vector<8x32xf32> to vector<1x8x32xf32>
    tpu.vector_store %arg6[%c0_26, %c0_27, %c0_28], %34 {strides = array<i32>} : memref<1x8x32xf32, #tpu.memory_space<vmem>>, vector<1x8x32xf32>,
    return
  }
  func.func @transform_0(%arg0: i32, %arg1: i32) -> (i32, i32, i32, i32) {
    %c0_i32 = arith.constant 0 : i32
    %c0_i32_0 = arith.constant 0 : i32
    %c0_i32_1 = arith.constant 0 : i32
    return %arg0, %arg1, %c0_i32, %c0_i32_0 : i32, i32, i32, i32
  }
  func.func @transform_1(%arg0: i32, %arg1: i32) -> (i32, i32, i32) {
    %c0_i32 = arith.constant 0 : i32
    %c0_i32_0 = arith.constant 0 : i32
    return %arg0, %arg1, %c0_i32 : i32, i32, i32
  }
  func.func @transform_2(%arg0: i32, %arg1: i32) -> (i32, i32, i32) {
    %c0_i32 = arith.constant 0 : i32
    %c0_i32_0 = arith.constant 0 : i32
    %c0_i32_1 = arith.constant 0 : i32
    %c0_i32_2 = arith.constant 0 : i32
    return %c0_i32, %c0_i32_0, %c0_i32_1 : i32, i32, i32
  }
  func.func @transform_3(%arg0: i32, %arg1: i32) -> (i32, i32) {
    %c0_i32 = arith.constant 0 : i32
    %c0_i32_0 = arith.constant 0 : i32
    %c0_i32_1 = arith.constant 0 : i32
    return %c0_i32, %c0_i32_0 : i32, i32
  }
  func.func @transform_4(%arg0: i32, %arg1: i32) -> (i32, i32, i32) {
    %c0_i32 = arith.constant 0 : i32
    %c0_i32_0 = arith.constant 0 : i32
    return %arg0, %arg1, %c0_i32 : i32, i32, i32
  }
}

</mosaic_0001>

<llo_original>
// kernel: gated_convolution.1
$region0: #{gated_convolution.1}
  #allocation0 [shape = 'u32[]', space=smem, size = 0x4, offset = 0x4, fixed_abs, tag = 'smem constant byte address 0x4 - core index']
  #allocation1 [shape = 'u32[144,128]{1,0:T(1,128)}', space=vmem, size = 0x12000, scoped, tag = 'internal scratch']
  #allocation2 [shape = 'f32[16,32]{1,0:T(8,128)}', space=vmem, size = 0x2000, scoped, tag = 'scratch operand']
  %s0 = inlined_call_operand.vmem [shape: f32[2,1,2,32], index: 0, kind: input, shape index: {}]
  %s1 = inlined_call_operand.hbm [shape: f32[2,8,32], index: 1, kind: input, shape index: {}]
  %s2 = inlined_call_operand.hbm [shape: f32[3,32,64], index: 2, kind: input, shape index: {}]
  %s3 = inlined_call_operand.vmem [shape: f32[1,64], index: 3, kind: input, shape index: {}]
  %s4 = inlined_call_operand.hbm [shape: f32[2,8,32], index: 4, kind: output, shape index: {}]
  %s5 = sld [smem:[#allocation0]]
  $region57: #{gated_convolution.1} parent=0
    _
  %s7 = ssub.s32 1, %s5
  %s8 = scalar_select 0, %s7, %s5
  $region1: #{gated_convolution.1} parent=0
    #allocation3 [shape = 'u8[8192]{0}', space=vmem, size = 0x2000, scoped, tag = 'input window, operand 1']
    #allocation4 [shape = 's32[2]{0}', space=sflag, size = 0x8, scoped, tag = 'scoped memory for gated_convolution.1']
    #allocation5 [shape = 's32[2]{0}', space=sflag, size = 0x8, scoped, tag = 'scoped memory for gated_convolution.1']
    #allocation6 [shape = 'u8[49152]{0}', space=vmem, size = 0xc000, scoped, tag = 'input window, operand 2, single buffered']
    #allocation7 [shape = 's32[1]{0}', space=sflag, size = 0x4, scoped, tag = 'scoped memory for gated_convolution.1']
    #allocation8 [shape = 'u8[8192]{0}', space=vmem, size = 0x2000, scoped, tag = 'output window, operand 0']
    %9 = vsyncpa [#allocation4], 0
    %s10 = scalar_lea.sflag [#allocation4], 1
    %11 = vsyncpa %s10, 0
    %12 = vsyncpa [#allocation7], 0
    %13 = vsyncpa [#allocation5], 0
    %s14 = scalar_lea.sflag [#allocation5], 1
    %15 = vsyncpa %s14, 0
    loop: start=0, step=1, limit=4
    $region2: #{gated_convolution.1} parent=1 // loop_pre_header
      _
    $region3: #{gated_convolution.1} parent=1 // loop_header
      %s17 = sphi 0, %s21
      %p18 = scmp.ge.s32.totalorder %s17, 4
      %s24 = sphi 0, %s36
      %s25 = sphi 0, %s32
      %s26 = sphi 0, %s24
      %s27 = sphi 0, %s25
      %s28 = sphi 0, %s26
      %s29 = sphi 0, %s27
      %s41 = sphi 0, %s43
      %s44 = sphi 0, %s41
      %s45 = sphi 0, %s44
      %s61 = sphi 0, %s45
      %s69 = sphi 0, %s71
      %s72 = sphi 0, %s69
      %s73 = sphi 0, %s72
      %s89 = sphi 0, %s73
      %s93 = sphi 0, %s93
      %s95 = sphi 0, %s93
      %s96 = sphi 0, %s95
      %s110 = sphi 0, %s96
      %s114 = sphi 0, %s114
      %s116 = sphi 0, %s114
      %s117 = sphi 0, %s116
      %s131 = sphi 0, %s117
      %s139 = sphi 0, %s141
      %s142 = sphi 0, %s139
      %s143 = sphi 0, %s142
      %s159 = sphi 0, %s143
    $region4: #{gated_convolution.1} parent=1 // loop_header_branch
      %20 = sbr.rel (%p18) target = $region8
    $region5: #{gated_convolution.1} parent=1 // loop_body
      %s22 = ssub.s32 %s17, 1
      %s23 = ssub.s32 %s17, 2
      %s30 = sadd.s32 1, %s25
      %p31 = scmp.ge.s32.totalorder %s30, 1
      %s32 = scalar_select %p31, 0, %s30
      %s33 = sadd.s32 1, %s24
      %s34 = scalar_select %p31, %s33, %s24
      %p35 = scmp.ge.s32.totalorder %s34, 2
      %s36 = scalar_select %p35, 0, %s34
      %s37 = ssub.s32 %s24, %s36
      %s38 = ssub.s32 %s25, %s32
      %s39 = sor.u32 %s37, %s38
      %p40 = scmp.eq.s32.totalorder %s39, 0
      %s42 = sadd.s32 %s41, 1
      %s43 = scalar_select %p40, %s41, %s42
      %p46 = pneg %p40
      %p47 = scmp.eq.s32.totalorder %s17, 1
      %p48 = por %p46, %p47
      %p49 = scmp.ne.s32.totalorder %s41, %s44
      %p50 = scmp.eq.s32.totalorder %s17, 0
      %p51 = por %p49, %p50
      %p52 = scmp.ne.s32.totalorder %s41, %s44
      %p53 = scmp.eq.s32.totalorder %s22, 1
      %p54 = por %p52, %p53
      %p55 = scmp.ne.s32.totalorder %s44, %s45
      %p56 = scmp.eq.s32.totalorder %s22, 0
      %p57 = por %p55, %p56
      %p58 = scmp.ne.s32.totalorder %s44, %s45
      %p59 = scmp.eq.s32.totalorder %s23, 1
      %p60 = por %p58, %p59
      %p62 = scmp.ne.s32.totalorder %s45, %s61
      %p63 = scmp.eq.s32.totalorder %s23, 0
      %p64 = por %p62, %p63
      %s65 = ssub.s32 %s24, %s36
      %s66 = ssub.s32 %s25, %s32
      %s67 = sor.u32 %s65, %s66
      %p68 = scmp.eq.s32.totalorder %s67, 0
      %s70 = sadd.s32 %s69, 1
      %s71 = scalar_select %p68, %s69, %s70
      %p74 = pneg %p68
      %p75 = scmp.eq.s32.totalorder %s17, 1
      %p76 = por %p74, %p75
      %p77 = scmp.ne.s32.totalorder %s69, %s72
      %p78 = scmp.eq.s32.totalorder %s17, 0
      %p79 = por %p77, %p78
      %p80 = scmp.ne.s32.totalorder %s69, %s72
      %p81 = scmp.eq.s32.totalorder %s22, 1
      %p82 = por %p80, %p81
      %p83 = scmp.ne.s32.totalorder %s72, %s73
      %p84 = scmp.eq.s32.totalorder %s22, 0
      %p85 = por %p83, %p84
      %p86 = scmp.ne.s32.totalorder %s72, %s73
      %p87 = scmp.eq.s32.totalorder %s23, 1
      %p88 = por %p86, %p87
      %p90 = scmp.ne.s32.totalorder %s73, %s89
      %p91 = scmp.eq.s32.totalorder %s23, 0
      %p92 = por %p90, %p91
      %s94 = sadd.s32 %s93, 1
      %p97 = scmp.eq.s32.totalorder %s17, 1
      %p98 = scmp.ne.s32.totalorder %s93, %s95
      %p99 = scmp.eq.s32.totalorder %s17, 0
      %p100 = por %p98, %p99
      %p101 = scmp.ne.s32.totalorder %s93, %s95
      %p102 = scmp.eq.s32.totalorder %s22, 1
      %p103 = por %p101, %p102
      %p104 = scmp.ne.s32.totalorder %s95, %s96
      %p105 = scmp.eq.s32.totalorder %s22, 0
      %p106 = por %p104, %p105
      %p107 = scmp.ne.s32.totalorder %s95, %s96
      %p108 = scmp.eq.s32.totalorder %s23, 1
      %p109 = por %p107, %p108
      %p111 = scmp.ne.s32.totalorder %s96, %s110
      %p112 = scmp.eq.s32.totalorder %s23, 0
      %p113 = por %p111, %p112
      %s115 = sadd.s32 %s114, 1
      %p118 = scmp.eq.s32.totalorder %s17, 1
      %p119 = scmp.ne.s32.totalorder %s114, %s116
      %p120 = scmp.eq.s32.totalorder %s17, 0
      %p121 = por %p119, %p120
      %p122 = scmp.ne.s32.totalorder %s114, %s116
      %p123 = scmp.eq.s32.totalorder %s22, 1
      %p124 = por %p122, %p123
      %p125 = scmp.ne.s32.totalorder %s116, %s117
      %p126 = scmp.eq.s32.totalorder %s22, 0
      %p127 = por %p125, %p126
      %p128 = scmp.ne.s32.totalorder %s116, %s117
      %p129 = scmp.eq.s32.totalorder %s23, 1
      %p130 = por %p128, %p129
      %p132 = scmp.ne.s32.totalorder %s117, %s131
      %p133 = scmp.eq.s32.totalorder %s23, 0
      %p134 = por %p132, %p133
      %s135 = ssub.s32 %s24, %s36
      %s136 = ssub.s32 %s25, %s32
      %s137 = sor.u32 %s135, %s136
      %p138 = scmp.eq.s32.totalorder %s137, 0
      %s140 = sadd.s32 %s139, 1
      %s141 = scalar_select %p138, %s139, %s140
      %p144 = pneg %p138
      %p145 = scmp.eq.s32.totalorder %s17, 1
      %p146 = por %p144, %p145
      %p147 = scmp.ne.s32.totalorder %s139, %s142
      %p148 = scmp.eq.s32.totalorder %s17, 0
      %p149 = por %p147, %p148
      %p150 = scmp.ne.s32.totalorder %s139, %s142
      %p151 = scmp.eq.s32.totalorder %s22, 1
      %p152 = por %p150, %p151
      %p153 = scmp.ne.s32.totalorder %s142, %s143
      %p154 = scmp.eq.s32.totalorder %s22, 0
      %p155 = por %p153, %p154
      %p156 = scmp.ne.s32.totalorder %s142, %s143
      %p157 = scmp.eq.s32.totalorder %s23, 1
      %p158 = por %p156, %p157
      %p160 = scmp.ne.s32.totalorder %s143, %s159
      %p161 = scmp.eq.s32.totalorder %s23, 0
      %p162 = por %p160, %p161
      %p163 = scmp.le.s32.totalorder 1, %s17
      %p164 = scmp.lt.s32.totalorder %s17, 3
      %p165 = pnand %p163, %p164
      %p166 = pneg %p165
      // Predicated region
      $region9: #{gated_convolution.1} parent=5 // pred_check
        _
      $region10: #{gated_convolution.1} parent=5 // pred_check_branch
        %168 = sbr.rel (%p165) target = $region12
      $region11: #{gated_convolution.1} parent=5 // pred_region
        %s169 = ssub.s32 %s17, 1
        // Predicated region
        $region13: #{gated_convolution.1} parent=11 // pred_check
          %p170 = pneg %p106
        $region14: #{gated_convolution.1} parent=11 // pred_check_branch
          %172 = sbr.rel (%p170) target = $region16
        $region15: #{gated_convolution.1} parent=11 // pred_region
          %s174 = ssub.s32 1536, 1536
          %175 = vsyncadd [#allocation7], %s174
          %s176 = sshll.u32 [#allocation6], 4
          %s177 = int_to_ptr.vmem [resolvable:$true] %s176
          %182 = dma.hbm_to_vmem [thread:$0]  %s2, 1536, %s177, [#allocation7], 128, 128, 8
        $region16: #{gated_convolution.1} parent=11 // pred_fallthru
          _
        // Predicated region
        $region17: #{gated_convolution.1} parent=11 // pred_check
          %p183 = pneg %p127
        $region18: #{gated_convolution.1} parent=11 // pred_check_branch
          %185 = sbr.rel (%p183) target = $region20
        $region19: #{gated_convolution.1} parent=11 // pred_region
          _
        $region20: #{gated_convolution.1} parent=11 // pred_fallthru
          _
      $region12: #{gated_convolution.1} parent=5 // pred_fallthru
        _
      %p186 = scmp.lt.s32.totalorder %s17, 2
      // Predicated region
      $region21: #{gated_convolution.1} parent=5 // pred_check
        %p187 = pneg %p186
      $region22: #{gated_convolution.1} parent=5 // pred_check_branch
        %189 = sbr.rel (%p187) target = $region24
      $region23: #{gated_convolution.1} parent=5 // pred_region
        // Predicated region
        $region25: #{gated_convolution.1} parent=23 // pred_check
          %p190 = pneg %p51
        $region26: #{gated_convolution.1} parent=23 // pred_check_branch
          %192 = sbr.rel (%p190) target = $region28
        $region27: #{gated_convolution.1} parent=23 // pred_region
          %p193 = scmp.lt.s32.totalorder %s24, 1
          %s194 = scalar_select %p193, %s24, 1
          %p195 = scmp.lt.s32.totalorder %s25, 0
          %s196 = scalar_select %p195, %s25, 0
          %s197 = sadd.s32 %s196, %s194
          %s198 = smul.addr %s197, 2
          %s199 = scalar_lea.vmem %s0, %s198
        $region28: #{gated_convolution.1} parent=23 // pred_fallthru
          _
        // Predicated region
        $region29: #{gated_convolution.1} parent=23 // pred_check
          %p200 = pneg %p79
        $region30: #{gated_convolution.1} parent=23 // pred_check_branch
          %202 = sbr.rel (%p200) target = $region32
        $region31: #{gated_convolution.1} parent=23 // pred_region
          %s203 = sand.u32 %s69, 1
          %s204 = scalar_lea.sflag [#allocation4], %s203
          %s205 = sand.u32 %s69, 1
          %s206 = smul.addr %s205, 8
          %s207 = scalar_lea.vmem [#allocation3], %s206
          %s209 = ssub.s32 128, 128
          %210 = vsyncadd %s204, %s209
          %s211 = sadd.s32 %s25, %s24
          %s212 = smul.addr %s211, 128
          %s213 = scalar_lea.hbm %s1, %s212
          %s215 = sshll.u32 %s207, 4
          %s216 = int_to_ptr.vmem [resolvable:$true] %s215
          %218 = dma.hbm_to_vmem [thread:$0]  %s213, 128, %s216, %s204
        $region32: #{gated_convolution.1} parent=23 // pred_fallthru
          _
      $region24: #{gated_convolution.1} parent=5 // pred_fallthru
        _
      %p219 = scmp.le.s32.totalorder 1, %s17
      %p220 = scmp.lt.s32.totalorder %s17, 3
      %p221 = pnand %p219, %p220
      %p222 = pneg %p221
      // Predicated region
      $region33: #{gated_convolution.1} parent=5 // pred_check
        _
      $region34: #{gated_convolution.1} parent=5 // pred_check_branch
        %224 = sbr.rel (%p221) target = $region36
      $region35: #{gated_convolution.1} parent=5 // pred_region
        %s225 = ssub.s32 %s17, 1
        %s226 = sand.u32 %s72, 1
        %s227 = scalar_lea.sflag [#allocation4], %s226
        %s228 = sand.u32 %s72, 1
        %s229 = smul.addr %s228, 8
        %s230 = scalar_lea.vmem [#allocation3], %s229
        // Predicated region
        $region37: #{gated_convolution.1} parent=35 // pred_check
          %p231 = pneg %p85
        $region38: #{gated_convolution.1} parent=35 // pred_check_branch
          %233 = sbr.rel (%p231) target = $region40
        $region39: #{gated_convolution.1} parent=35 // pred_region
          %234 = dma.done %s227, 128
        $region40: #{gated_convolution.1} parent=35 // pred_fallthru
          _
        // Predicated region
        $region41: #{gated_convolution.1} parent=35 // pred_check
          %p235 = pneg %p106
        $region42: #{gated_convolution.1} parent=35 // pred_check_branch
          %237 = sbr.rel (%p235) target = $region44
        $region43: #{gated_convolution.1} parent=35 // pred_region
          %238 = dma.done [#allocation7], 1536
        $region44: #{gated_convolution.1} parent=35 // pred_fallthru
          _
        %p239 = scmp.lt.s32.totalorder %s26, 1
        %s240 = scalar_select %p239, %s26, 1
        %p241 = scmp.lt.s32.totalorder %s27, 0
        %s242 = scalar_select %p241, %s27, 0
        %s243 = sadd.s32 %s242, %s240
        %s244 = smul.addr %s243, 2
        %s245 = scalar_lea.vmem %s0, %s244
        %p246 = pneg %p57
        %p247 = pneg %p54
        %s248 = sand.u32 %s72, 1
        %s249 = scalar_lea.sflag [#allocation4], %s248
        %s250 = sand.u32 %s72, 1
        %s251 = smul.addr %s250, 8
        %s252 = scalar_lea.vmem [#allocation3], %s251
        %p253 = pneg %p85
        %p254 = pneg %p82
        %p255 = pneg %p106
        %p256 = pneg %p103
        %p257 = pneg %p127
        %p258 = pneg %p124
        %p259 = pneg %p155
        %p260 = pneg %p152
        %s261 = sand.u32 %s142, 1
        %s262 = scalar_lea.sflag [#allocation5], %s261
        %s263 = sand.u32 %s142, 1
        %s264 = smul.addr %s263, 8
        %s265 = scalar_lea.vmem [#allocation8], %s264
        %p266 = scmp.lt.s32.totalorder %s26, 1
        %s267 = scalar_select %p266, %s26, 1
        %p268 = scmp.lt.s32.totalorder %s27, 0
        %s269 = scalar_select %p268, %s27, 0
        %s270 = sadd.s32 %s269, %s267
        %s271 = smul.addr %s270, 2
        %s272 = scalar_lea.vmem %s0, %s271
        %v273 = vld [vmem:[%s272] sm:$0x3]
        %vm274 = vcmask 254976
        %275 = vst.msk [vmem:[#allocation2 + $0x6] sm:$0x3] %vm274, %v273
        %v276 = vld [vmem:[%s230] sm:$0xff]
        %vm277 = vcmask 261120
        %278 = vst.msk [vmem:[#allocation2 + $0x8] sm:$0xff] %vm277, %v276
        %v279 = vld [vmem:[%s230] sm:$0xff]
        %s280 = scalar_lea.vmem [#allocation6], 64
        %v281 = vld [vmem:[%s280] sm:$0xff]
        %v282 = vld [vmem:[%s280 + $0x8] sm:$0xff]
        %v283 = vld [vmem:[%s280 + $0x10] sm:$0xff]
        %v284 = vld [vmem:[%s280 + $0x18] sm:$0xff]
        %v285 = vld [vmem:[#allocation2 + $0x6] sm:$0xff]
        %v286 = vld [vmem:[#allocation6] sm:$0xff]
        %v287 = vld [vmem:[#allocation6 + $0x8] sm:$0xff]
        %v288 = vld [vmem:[#allocation6 + $0x10] sm:$0xff]
        %v289 = vld [vmem:[#allocation6 + $0x18] sm:$0xff]
        %v291 = vsel %vm277, %v285, 0
        %293 = vmatprep.subr.mxu0 0.0
        %294 = vmatpush1.msra.mxu0 %v286
        %295 = vmatprep.subr.mxu0 0.0
        %296 = vmatpush1.msra.mxu0 %v287
        %297 = vmatprep.subr.mxu0 0.0
        %298 = vmatpush1.msra.mxu0 %v288
        %299 = vmatprep.subr.mxu0 0.0
        %300 = vmatpush1.msra.mxu0 %v289
        %301 = vmatprep.subr.mxu0 0.0
        %302 = vmatpush1.msra.mxu0 0.0
        %303 = vmatprep.subr.mxu0 0.0
        %304 = vmatpush1.msra.mxu0 0.0
        %305 = vmatprep.subr.mxu0 0.0
        %306 = vmatpush1.msra.mxu0 0.0
        %307 = vmatprep.subr.mxu0 0.0
        %308 = vmatpush1.msra.mxu0 0.0
        %309 = vmatprep.subr.mxu0 0.0
        %310 = vmatpush1.msra.mxu0 0.0
        %311 = vmatprep.subr.mxu0 0.0
        %312 = vmatpush1.msra.mxu0 0.0
        %313 = vmatprep.subr.mxu0 0.0
        %314 = vmatpush1.msra.mxu0 0.0
        %315 = vmatprep.subr.mxu0 0.0
        %316 = vmatpush1.msra.mxu0 0.0
        %317 = vmatprep.subr.mxu0 0.0
        %318 = vmatpush1.msra.mxu0 0.0
        %319 = vmatprep.subr.mxu0 0.0
        %320 = vmatpush1.msra.mxu0 0.0
        %321 = vmatprep.subr.mxu0 0.0
        %322 = vmatpush1.msra.mxu0 0.0
        %323 = vmatprep.subr.mxu0 0.0
        %324 = vmatpush1.msra.mxu0 0.0
        %325 = vmatprep.subr.mxu0 0.0
        %326 = vmatpush1.msra.mxu0 0.0
        %327 = vmatprep.subr.mxu0 0.0
        %328 = vmatpush1.msra.mxu0 0.0
        %329 = vmatprep.subr.mxu0 0.0
        %330 = vmatpush1.msra.mxu0 0.0
        %331 = vmatprep.subr.mxu0 0.0
        %332 = vmatpush1.msra.mxu0 0.0
        %333 = vmatprep.subr.mxu0 0.0
        %334 = vmatpush1.msra.mxu0 0.0
        %335 = vmatprep.subr.mxu0 0.0
        %336 = vmatpush1.msra.mxu0 0.0
        %337 = vmatprep.subr.mxu0 0.0
        %338 = vmatpush1.msra.mxu0 0.0
        %339 = vmatprep.subr.mxu0 0.0
        %340 = vmatpush1.msra.mxu0 0.0
        %341 = vmatprep.subr.mxu0 0.0
        %342 = vmatpush1.msra.mxu0 0.0
        %343 = vmatprep.subr.mxu0 0.0
        %344 = vmatpush1.msra.mxu0 0.0
        %345 = vmatprep.subr.mxu0 0.0
        %346 = vmatpush1.msra.mxu0 0.0
        %347 = vmatprep.subr.mxu0 0.0
        %348 = vmatpush1.msra.mxu0 0.0
        %349 = vmatprep.subr.mxu0 0.0
        %350 = vmatpush1.msra.mxu0 0.0
        %351 = vmatprep.subr.mxu0 0.0
        %352 = vmatpush1.msra.mxu0 0.0
        %353 = vmatprep.subr.mxu0 0.0
        %354 = vmatpush1.msra.mxu0 0.0
        %355 = vmatprep.subr.mxu0 0.0
        %356 = vmatpush1.msra.mxu0 0.0
        %357 = vmatprep.mubr.f32.mxu0 0.0
        %358 = vmatmul.mubr.f32.gmra.mrb[0].mxu0 %v291
        %v359 = vpop.f32.mrb[0].mxu0
        %v360 = vadd.f32 0.0, %v359
        %v361 = vpop.f32.mrb[0].mxu0
        %362 = vdwg.mxu0
        %v364 = vsel %vm277, %v279, 0
        %366 = vmatprep.subr.mxu0 0.0
        %367 = vmatpush1.msra.mxu0 %v281
        %368 = vmatprep.subr.mxu0 0.0
        %369 = vmatpush1.msra.mxu0 %v282
        %370 = vmatprep.subr.mxu0 0.0
        %371 = vmatpush1.msra.mxu0 %v283
        %372 = vmatprep.subr.mxu0 0.0
        %373 = vmatpush1.msra.mxu0 %v284
        %374 = vmatprep.subr.mxu0 0.0
        %375 = vmatpush1.msra.mxu0 0.0
        %376 = vmatprep.subr.mxu0 0.0
        %377 = vmatpush1.msra.mxu0 0.0
        %378 = vmatprep.subr.mxu0 0.0
        %379 = vmatpush1.msra.mxu0 0.0
        %380 = vmatprep.subr.mxu0 0.0
        %381 = vmatpush1.msra.mxu0 0.0
        %382 = vmatprep.subr.mxu0 0.0
        %383 = vmatpush1.msra.mxu0 0.0
        %384 = vmatprep.subr.mxu0 0.0
        %385 = vmatpush1.msra.mxu0 0.0
        %386 = vmatprep.subr.mxu0 0.0
        %387 = vmatpush1.msra.mxu0 0.0
        %388 = vmatprep.subr.mxu0 0.0
        %389 = vmatpush1.msra.mxu0 0.0
        %390 = vmatprep.subr.mxu0 0.0
        %391 = vmatpush1.msra.mxu0 0.0
        %392 = vmatprep.subr.mxu0 0.0
        %393 = vmatpush1.msra.mxu0 0.0
        %394 = vmatprep.subr.mxu0 0.0
        %395 = vmatpush1.msra.mxu0 0.0
        %396 = vmatprep.subr.mxu0 0.0
        %397 = vmatpush1.msra.mxu0 0.0
        %398 = vmatprep.subr.mxu0 0.0
        %399 = vmatpush1.msra.mxu0 0.0
        %400 = vmatprep.subr.mxu0 0.0
        %401 = vmatpush1.msra.mxu0 0.0
        %402 = vmatprep.subr.mxu0 0.0
        %403 = vmatpush1.msra.mxu0 0.0
        %404 = vmatprep.subr.mxu0 0.0
        %405 = vmatpush1.msra.mxu0 0.0
        %406 = vmatprep.subr.mxu0 0.0
        %407 = vmatpush1.msra.mxu0 0.0
        %408 = vmatprep.subr.mxu0 0.0
        %409 = vmatpush1.msra.mxu0 0.0
        %410 = vmatprep.subr.mxu0 0.0
        %411 = vmatpush1.msra.mxu0 0.0
        %412 = vmatprep.subr.mxu0 0.0
        %413 = vmatpush1.msra.mxu0 0.0
        %414 = vmatprep.subr.mxu0 0.0
        %415 = vmatpush1.msra.mxu0 0.0
        %416 = vmatprep.subr.mxu0 0.0
        %417 = vmatpush1.msra.mxu0 0.0
        %418 = vmatprep.subr.mxu0 0.0
        %419 = vmatpush1.msra.mxu0 0.0
        %420 = vmatprep.subr.mxu0 0.0
        %421 = vmatpush1.msra.mxu0 0.0
        %422 = vmatprep.subr.mxu0 0.0
        %423 = vmatpush1.msra.mxu0 0.0
        %424 = vmatprep.subr.mxu0 0.0
        %425 = vmatpush1.msra.mxu0 0.0
        %426 = vmatprep.subr.mxu0 0.0
        %427 = vmatpush1.msra.mxu0 0.0
        %428 = vmatprep.subr.mxu0 0.0
        %429 = vmatpush1.msra.mxu0 0.0
        %430 = vmatprep.mubr.f32.mxu0 0.0
        %431 = vmatmul.mubr.f32.gmra.mrb[0].mxu0 %v364
        %v432 = vpop.f32.mrb[0].mxu0
        %v433 = vadd.f32 %v360, %v432
        %v434 = vpop.f32.mrb[0].mxu0
        %435 = vdwg.mxu0
        %v436 = vld [vmem:[#allocation2 + $0x7] sm:$0xff]
        %s437 = scalar_lea.vmem [#allocation6], 32
        %v438 = vld [vmem:[%s437] sm:$0xff]
        %v439 = vld [vmem:[%s437 + $0x8] sm:$0xff]
        %v440 = vld [vmem:[%s437 + $0x10] sm:$0xff]
        %v441 = vld [vmem:[%s437 + $0x18] sm:$0xff]
        %v443 = vsel %vm277, %v436, 0
        %445 = vmatprep.subr.mxu0 0.0
        %446 = vmatpush1.msra.mxu0 %v438
        %447 = vmatprep.subr.mxu0 0.0
        %448 = vmatpush1.msra.mxu0 %v439
        %449 = vmatprep.subr.mxu0 0.0
        %450 = vmatpush1.msra.mxu0 %v440
        %451 = vmatprep.subr.mxu0 0.0
        %452 = vmatpush1.msra.mxu0 %v441
        %453 = vmatprep.subr.mxu0 0.0
        %454 = vmatpush1.msra.mxu0 0.0
        %455 = vmatprep.subr.mxu0 0.0
        %456 = vmatpush1.msra.mxu0 0.0
        %457 = vmatprep.subr.mxu0 0.0
        %458 = vmatpush1.msra.mxu0 0.0
        %459 = vmatprep.subr.mxu0 0.0
        %460 = vmatpush1.msra.mxu0 0.0
        %461 = vmatprep.subr.mxu0 0.0
        %462 = vmatpush1.msra.mxu0 0.0
        %463 = vmatprep.subr.mxu0 0.0
        %464 = vmatpush1.msra.mxu0 0.0
        %465 = vmatprep.subr.mxu0 0.0
        %466 = vmatpush1.msra.mxu0 0.0
        %467 = vmatprep.subr.mxu0 0.0
        %468 = vmatpush1.msra.mxu0 0.0
        %469 = vmatprep.subr.mxu0 0.0
        %470 = vmatpush1.msra.mxu0 0.0
        %471 = vmatprep.subr.mxu0 0.0
        %472 = vmatpush1.msra.mxu0 0.0
        %473 = vmatprep.subr.mxu0 0.0
        %474 = vmatpush1.msra.mxu0 0.0
        %475 = vmatprep.subr.mxu0 0.0
        %476 = vmatpush1.msra.mxu0 0.0
        %477 = vmatprep.subr.mxu0 0.0
        %478 = vmatpush1.msra.mxu0 0.0
        %479 = vmatprep.subr.mxu0 0.0
        %480 = vmatpush1.msra.mxu0 0.0
        %481 = vmatprep.subr.mxu0 0.0
        %482 = vmatpush1.msra.mxu0 0.0
        %483 = vmatprep.subr.mxu0 0.0
        %484 = vmatpush1.msra.mxu0 0.0
        %485 = vmatprep.subr.mxu0 0.0
        %486 = vmatpush1.msra.mxu0 0.0
        %487 = vmatprep.subr.mxu0 0.0
        %488 = vmatpush1.msra.mxu0 0.0
        %489 = vmatprep.subr.mxu0 0.0
        %490 = vmatpush1.msra.mxu0 0.0
        %491 = vmatprep.subr.mxu0 0.0
        %492 = vmatpush1.msra.mxu0 0.0
        %493 = vmatprep.subr.mxu0 0.0
        %494 = vmatpush1.msra.mxu0 0.0
        %495 = vmatprep.subr.mxu0 0.0
        %496 = vmatpush1.msra.mxu0 0.0
        %497 = vmatprep.subr.mxu0 0.0
        %498 = vmatpush1.msra.mxu0 0.0
        %499 = vmatprep.subr.mxu0 0.0
        %500 = vmatpush1.msra.mxu0 0.0
        %501 = vmatprep.subr.mxu0 0.0
        %502 = vmatpush1.msra.mxu0 0.0
        %503 = vmatprep.subr.mxu0 0.0
        %504 = vmatpush1.msra.mxu0 0.0
        %505 = vmatprep.subr.mxu0 0.0
        %506 = vmatpush1.msra.mxu0 0.0
        %507 = vmatprep.subr.mxu0 0.0
        %508 = vmatpush1.msra.mxu0 0.0
        %509 = vmatprep.mubr.f32.mxu0 0.0
        %510 = vmatmul.mubr.f32.gmra.mrb[0].mxu0 %v443
        %v511 = vpop.f32.mrb[0].mxu0
        %v512 = vadd.f32 0.0, %v511
        %v513 = vpop.f32.mrb[0].mxu0
        %514 = vdwg.mxu0
        %v515 = vadd.f32 %v433, %v512
        %v516 = vld [vmem:[%s3] sm:$0x1]
        %v518 = vlaneseq
        %v519 = vshrl.u32 %v518, 7
        %v520 = vsub.s32 0, %v519
        %v521 = vrot.slane %v516, %v520
        %v523 = vadd.f32 %v515, %v521
        %v524 = vxor.u32 %v523, 2147483648
        %v525 = vmul.f32 %v524, 1.442695
        %v526 = vpow.pop %v525
        %v527 = vadd.f32 %v526, 1.0
        %v528 = vrcp.pop %v527
        %v529 = vmul.f32 1.0, %v528
        %531 = vrot.lane.b32.xlu0 %v529, 96
        %v532 = vpop.permute.xlu0 %531
        %v534 = vmul.f32 %v523, %v532
        %535 = vst.msk [vmem:[%s265] sm:$0xff] %vm277, %v534
        %s536 = sand.u32 %s142, 1
        %s537 = scalar_lea.sflag [#allocation5], %s536
        %s538 = sand.u32 %s142, 1
        %s539 = smul.addr %s538, 8
        %s540 = scalar_lea.vmem [#allocation8], %s539
        // Predicated region
        $region45: #{gated_convolution.1} parent=35 // pred_check
          %p541 = pneg %p152
        $region46: #{gated_convolution.1} parent=35 // pred_check_branch
          %543 = sbr.rel (%p541) target = $region48
        $region47: #{gated_convolution.1} parent=35 // pred_region
          %s545 = ssub.s32 128, 128
          %546 = vsyncadd %s537, %s545
          %s547 = sadd.s32 %s27, %s26
          %s548 = smul.addr %s547, 128
          %s549 = scalar_lea.hbm %s4, %s548
          %s551 = sshll.u32 %s540, 4
          %s552 = int_to_ptr.vmem [resolvable:$true] %s551
          %554 = dma.vmem_to_hbm [thread:$0]  %s552, 128, %s549, %s537
        $region48: #{gated_convolution.1} parent=35 // pred_fallthru
          _
      $region36: #{gated_convolution.1} parent=5 // pred_fallthru
        _
      %p555 = scmp.le.s32.totalorder 2, %s17
      // Predicated region
      $region49: #{gated_convolution.1} parent=5 // pred_check
        %p556 = pneg %p555
      $region50: #{gated_convolution.1} parent=5 // pred_check_branch
        %558 = sbr.rel (%p556) target = $region52
      $region51: #{gated_convolution.1} parent=5 // pred_region
        %s559 = ssub.s32 %s17, 2
        // Predicated region
        $region53: #{gated_convolution.1} parent=51 // pred_check
          %p560 = pneg %p158
        $region54: #{gated_convolution.1} parent=51 // pred_check_branch
          %562 = sbr.rel (%p560) target = $region56
        $region55: #{gated_convolution.1} parent=51 // pred_region
          %s563 = sand.u32 %s143, 1
          %s564 = scalar_lea.sflag [#allocation5], %s563
          %s565 = sand.u32 %s143, 1
          %s566 = smul.addr %s565, 8
          %s567 = scalar_lea.vmem [#allocation8], %s566
          %568 = dma.done %s564, 128
        $region56: #{gated_convolution.1} parent=51 // pred_fallthru
          _
      $region52: #{gated_convolution.1} parent=5 // pred_fallthru
        _
    $region6: #{gated_convolution.1} parent=1 // loop_footer
      %s21 = sadd.s32 1, %s17
    $region7: #{gated_convolution.1} parent=1 // loop_footer_branch
      %16 = sbr.rel target = $region3
    $region8: #{gated_convolution.1} parent=1 // loop_exit
      _
    %569 = vsyncpa [#allocation4], 1
    %s570 = scalar_lea.sflag [#allocation4], 1
    %571 = vsyncpa %s570, 1
    %572 = vsyncpa [#allocation7], 1
    %573 = vsyncpa [#allocation5], 1
    %s574 = scalar_lea.sflag [#allocation5], 1
    %575 = vsyncpa %s574, 1

</llo_original>
